<compile_context>
chip_gen: v7x
topology: tpu7x:2x2x1
jax: 0.10.0
libtpu: 0.0.40
codegen_flags: <defaults>
</compile_context>

<pallas_src>
import functools

import jax
import jax.numpy as jnp
from jax.experimental import pallas as pl
from jax.experimental.pallas import tpu as pltpu

GN_EPS = 1e-5  # nn.GroupNorm default eps


def _sa_kernel(x_ref, p_ref, o_ref, *, inv_s, s_real):
    """One grid step: (tb batches) x (tg groups), both branches, shuffled placement.

    x_ref : (tb, tg, 2, c2, S)       input; dim 2 = [channel-branch, spatial-branch]
    p_ref : (4, c2, 1)               [cweight, cbias, ew=sweight*gn_w, eb=sweight*gn_b+sbias]
    o_ref : (tb, tg, 2, c2, S_pad)   output block, already in channel-shuffled order
    """
    x0 = x_ref[:, :, 0]              # (tb, tg, c2, S) channel-attention input
    x1 = x_ref[:, :, 1]              # (tb, tg, c2, S) spatial-attention input

    cw = p_ref[0]                    # (c2, 1) -> broadcasts over (tb, tg, c2, S)
    cb = p_ref[1]
    ew = p_ref[2]
    eb = p_ref[3]

    # ---- channel branch: global average pool over spatial -> per-channel gate ----
    mean0 = jnp.sum(x0, axis=-1, keepdims=True) * inv_s          # (tb, tg, c2, 1)
    gate0 = jax.nn.sigmoid(cw * mean0 + cb)                      # tiny (lane-0 column)
    o0 = x0 * gate0

    # ---- spatial branch: per-channel GroupNorm over S, folded affine, gate ----
    # One-pass biased variance (matches PyTorch GroupNorm); f32 accumulation.
    mean1 = jnp.sum(x1, axis=-1, keepdims=True) * inv_s
    ex2 = jnp.sum(x1 * x1, axis=-1, keepdims=True) * inv_s
    var1 = jnp.maximum(ex2 - mean1 * mean1, 0.0)
    rstd = jax.lax.rsqrt(var1 + GN_EPS)
    a = ew * rstd                                                # (tb, tg, c2, 1)
    bias1 = eb - a * mean1
    t1 = a * x1 + bias1
    # sigmoid(t) = 0.5 * (1 + tanh(t/2)): one EUP op per element instead of exp+div
    gate1 = 0.5 + 0.5 * jnp.tanh(0.5 * t1)
    o1 = x1 * gate1

    # Shuffled placement: branch m of local group t goes to output row (t, m).
    if s_real == o_ref.shape[-1]:
        o_ref[:, :, 0] = o0
        o_ref[:, :, 1] = o1
    else:  # lane-padded output: only the first s_real lanes are meaningful
        o_ref[:, :, 0, :, :s_real] = o0
        o_ref[:, :, 1, :, :s_real] = o1


def _pick_tiles(n_batch, n_half, bytes_per_group, target_bytes):
    """Largest (tb, tg) with tg | n_half, tb | n_batch, block <= target_bytes."""
    tg = 1
    for cand in range(n_half, 0, -1):
        if n_half % cand == 0 and cand * bytes_per_group <= target_bytes:
            tg = cand
            break
    tb = 1
    for cand in range(n_batch, 0, -1):
        if n_batch % cand == 0 and cand * tg * bytes_per_group <= target_bytes:
            tb = cand
            break
    return tb, tg


def shuffle_attention(x, params, G, *, block_target_bytes=2 * 1024 * 1024):
    """Fused ShuffleAttention forward (channel shuffle folded into the kernel).

    x      : (B, C, H, W, D) float32
    params : (6, C // (2*G), 1) float32 — cweight, cbias, sweight, sbias, gn_w, gn_b
    """
    b, c, h, w, d = x.shape
    if c % (2 * G) != 0:
        raise ValueError("channel must be divisible by 2*G")
    if G % 2 != 0:
        # TODO(synk): odd G makes one group's branches straddle the shuffle halves;
        # would need an unfused epilogue. Module default (G=8) and common configs are even.
        raise NotImplementedError("fused channel-shuffle path requires even G")

    c2 = c // (2 * G)
    half = G // 2
    s = h * w * d
    s_pad = ((s + 127) // 128) * 128          # lane-dense output stores

    # Free row-major view: (B, G, 2, c2, S); per group, dim 2 splits the two branches.
    x5 = x.reshape(b, G, 2, c2, s)

    # Fold GroupNorm affine into sweight/sbias:  t = ew * x_hat + eb.
    cw, cb, sw, sb, gw, gb = (params[i] for i in range(6))
    p = jnp.stack([cw, cb, sw * gw, sw * gb + sb], axis=0)       # (4, c2, 1)

    elem = x.dtype.itemsize
    bytes_per_group = 2 * c2 * s * elem
    tb, tg = _pick_tiles(b, half, bytes_per_group, block_target_bytes)
    nb, ng = b // tb, half // tg
    grid = (2, nb, ng)                        # (shuffle-half j, batch, group-pair blocks)

    kernel = functools.partial(_sa_kernel, inv_s=1.0 / s, s_real=s)

    out = pl.pallas_call(
        kernel,
        out_shape=jax.ShapeDtypeStruct((b, half, 2, c2, 2 * s_pad), x.dtype),
        grid=grid,
        in_specs=[
            # groups g in [j*half + ig*tg, j*half + (ig+1)*tg)
            pl.BlockSpec((tb, tg, 2, c2, s),
                         lambda j, ib, ig: (ib, j * ng + ig, 0, 0, 0)),
            # tiny parameter block, constant across the grid
            pl.BlockSpec((4, c2, 1), lambda j, ib, ig: (0, 0, 0)),
        ],
        # destination: batch ib, group-pairs ig, both branch rows, all channels,
        # shuffle-half j of the flattened (2*S_pad) lane dim.
        out_specs=pl.BlockSpec((tb, tg, 2, c2, s_pad),
                               lambda j, ib, ig: (ib, ig, 0, 0, j)),
        compiler_params=pltpu.CompilerParams(
            dimension_semantics=("parallel", "parallel", "parallel"),
            vmem_limit_bytes=32 * 1024 * 1024,
        ),
        cost_estimate=pl.CostEstimate(
            flops=10 * b * c * s,
            transcendentals=(b * c * s) // 2,
            bytes_accessed=2 * b * c * s * elem,
        ),
    )(x5, p)

    if s_pad == s:
        # Row-major flattening of (half, 2, c2, [j, s]) IS the shuffled channel
        # order 2*(g'*c2 + r) + j  ->  pure (free) reshape, no data movement.
        return out.reshape(b, c, h, w, d)
    # Ragged S: drop the lane padding of each shuffle half, then reshape.
    out = out.reshape(b, c // 2, 2, s_pad)[..., :s]
    return out.reshape(b, c, h, w, d)


def shuffle_attention_ref(x, params, G):
    """Pure-JAX reference mirroring the PyTorch forward exactly."""
    b, c, h, w, d = x.shape
    c2 = c // (2 * G)
    cw, cb, sw, sb, gw, gb = [params[i].reshape(1, c2, 1, 1, 1) for i in range(6)]
    xg = x.reshape(b * G, c // G, h, w, d)
    x0, x1 = xg[:, :c2], xg[:, c2:]

    xc = x0.mean(axis=(2, 3, 4), keepdims=True)
    xc = cw * xc + cb
    xc = x0 * jax.nn.sigmoid(xc)

    mu = x1.mean(axis=(2, 3, 4), keepdims=True)
    var = ((x1 - mu) ** 2).mean(axis=(2, 3, 4), keepdims=True)
    xs = (x1 - mu) / jnp.sqrt(var + GN_EPS) * gw + gb
    xs = sw * xs + sb
    xs = x1 * jax.nn.sigmoid(xs)

    out = jnp.concatenate([xc, xs], axis=1).reshape(b, c, h, w, d)
    out = (
        out.reshape(b, 2, c // 2, h, w, d)
        .transpose(0, 2, 1, 3, 4, 5)
        .reshape(b, c, h, w, d)
    )
    return out


if __name__ == "__main__":
    def make_params(key, c2):
        # Module defaults (zeros/ones) perturbed deterministically so every term matters.
        pr = 0.1 * jax.random.normal(key, (6, c2, 1), dtype=jnp.float32)
        base = jnp.stack(
            [
                jnp.zeros((c2, 1), jnp.float32),  # cweight
                jnp.ones((c2, 1), jnp.float32),   # cbias
                jnp.zeros((c2, 1), jnp.float32),  # sweight
                jnp.ones((c2, 1), jnp.float32),   # sbias
                jnp.ones((c2, 1), jnp.float32),   # gn.weight
                jnp.zeros((c2, 1), jnp.float32),  # gn.bias
            ],
            axis=0,
        )
        return base + pr

    key = jax.random.PRNGKey(0)
    configs = [
        # (B, C, H, W, D, G)
        (2, 32, 8, 8, 8, 2),   # lane-aligned S = 512
        (1, 32, 4, 4, 8, 4),   # G = 4: multi-group shuffle pairing per block
        (1, 32, 7, 7, 7, 2),   # ragged S = 343 -> lane-padded output path
    ]

    for (B, C, H, W, D, G) in configs:
        key, kx, kp = jax.random.split(key, 3)
        C2 = C // (2 * G)
        x = jax.random.normal(kx, (B, C, H, W, D), dtype=jnp.float32)
        params = make_params(kp, C2)

        fn = jax.jit(functools.partial(shuffle_attention, G=G))
        out = jax.block_until_ready(fn(x, params))
        ref = shuffle_attention_ref(x, params, G)

        assert out.shape == (B, C, H, W, D)
        err = float(jnp.max(jnp.abs(out - ref)))
        assert err < 1e-4, ((B, C, H, W, D, G), err)

    print("KERNEL_OK")
</pallas_src>

<mosaic_0001>
module attributes {stable_mosaic.version = 11 : i64} {
  func.func @_sa_kernel(%arg0: i32, %arg1: i32, %arg2: i32, %arg3: memref<2x1x2x8x512xf32, #tpu.memory_space<vmem>>, %arg4: memref<4x8x1xf32, #tpu.memory_space<vmem>>, %arg5: memref<2x1x2x8x512xf32, #tpu.memory_space<vmem>>) attributes {dimension_semantics = [#tpu.dimension_semantics<parallel>, #tpu.dimension_semantics<parallel>, #tpu.dimension_semantics<parallel>], iteration_bounds = array<i64: 2, 1, 1>, scalar_prefetch = 0 : i64, scratch_operands = 0 : i64, tpu.core_type = #tpu.core_type<tc>, window_params = [{transform_indices = @transform_0, window_bounds = array<i64: 2, 1, 2, 8, 512>}, {pipeline_mode = #tpu.pipeline_mode<synchronous>, transform_indices = @transform_1, window_bounds = array<i64: 4, 8, 1>}, {transform_indices = @transform_2, window_bounds = array<i64: 2, 1, 2, 8, 512>}]} {
    %c0 = arith.constant 0 : index
    %c0_0 = arith.constant 0 : index
    %c0_1 = arith.constant 0 : index
    %c0_2 = arith.constant 0 : index
    %c0_3 = arith.constant 0 : index
    %0 = vector.load %arg3[%c0, %c0_0, %c0_1, %c0_2, %c0_3] : memref<2x1x2x8x512xf32, #tpu.memory_space<vmem>>, vector<2x1x1x8x512xf32>
    %1 = vector.shape_cast %0 : vector<2x1x1x8x512xf32> to vector<2x1x8x512xf32>
    %c0_4 = arith.constant 0 : index
    %c0_5 = arith.constant 0 : index
    %c1 = arith.constant 1 : index
    %c0_6 = arith.constant 0 : index
    %c0_7 = arith.constant 0 : index
    %2 = vector.load %arg3[%c0_4, %c0_5, %c1, %c0_6, %c0_7] : memref<2x1x2x8x512xf32, #tpu.memory_space<vmem>>, vector<2x1x1x8x512xf32>
    %3 = vector.shape_cast %2 : vector<2x1x1x8x512xf32> to vector<2x1x8x512xf32>
    %c0_8 = arith.constant 0 : index
    %c0_9 = arith.constant 0 : index
    %c0_10 = arith.constant 0 : index
    %4 = vector.load %arg4[%c0_8, %c0_9, %c0_10] : memref<4x8x1xf32, #tpu.memory_space<vmem>>, vector<1x8x1xf32>
    %5 = vector.shape_cast %4 : vector<1x8x1xf32> to vector<8x1xf32>
    %c1_11 = arith.constant 1 : index
    %c0_12 = arith.constant 0 : index
    %c0_13 = arith.constant 0 : index
    %6 = vector.load %arg4[%c1_11, %c0_12, %c0_13] : memref<4x8x1xf32, #tpu.memory_space<vmem>>, vector<1x8x1xf32>
    %7 = vector.shape_cast %6 : vector<1x8x1xf32> to vector<8x1xf32>
    %c2 = arith.constant 2 : index
    %c0_14 = arith.constant 0 : index
    %c0_15 = arith.constant 0 : index
    %8 = vector.load %arg4[%c2, %c0_14, %c0_15] : memref<4x8x1xf32, #tpu.memory_space<vmem>>, vector<1x8x1xf32>
    %9 = vector.shape_cast %8 : vector<1x8x1xf32> to vector<8x1xf32>
    %c3 = arith.constant 3 : index
    %c0_16 = arith.constant 0 : index
    %c0_17 = arith.constant 0 : index
    %10 = vector.load %arg4[%c3, %c0_16, %c0_17] : memref<4x8x1xf32, #tpu.memory_space<vmem>>, vector<1x8x1xf32>
    %11 = vector.shape_cast %10 : vector<1x8x1xf32> to vector<8x1xf32>
    %cst = arith.constant dense<0.000000e+00> : vector<2x1x8xf32>
    %12 = vector.multi_reduction <add>, %1, %cst [3] : vector<2x1x8x512xf32> to vector<2x1x8xf32>
    %13 = vector.shape_cast %12 : vector<2x1x8xf32> to vector<2x1x8x1xf32>
    %cst_18 = arith.constant 0.001953125 : f32
    %14 = vector.broadcast %cst_18 : f32 to vector<2x1x8x1xf32>
    %15 = arith.mulf %13, %14 : vector<2x1x8x1xf32>
    %16 = vector.shape_cast %5 : vector<8x1xf32> to vector<1x1x8x1xf32>
    %17 = vector.broadcast %16 : vector<1x1x8x1xf32> to vector<2x1x8x1xf32>
    %18 = arith.mulf %17, %15 : vector<2x1x8x1xf32>
    %19 = vector.shape_cast %7 : vector<8x1xf32> to vector<1x1x8x1xf32>
    %20 = vector.broadcast %19 : vector<1x1x8x1xf32> to vector<2x1x8x1xf32>
    %21 = arith.addf %18, %20 : vector<2x1x8x1xf32>
    %22 = arith.negf %21 : vector<2x1x8x1xf32>
    %23 = math.exp %22 : vector<2x1x8x1xf32>
    %cst_19 = arith.constant 1.000000e+00 : f32
    %24 = vector.broadcast %cst_19 : f32 to vector<2x1x8x1xf32>
    %25 = arith.addf %24, %23 : vector<2x1x8x1xf32>
    %26 = arith.divf %24, %25 : vector<2x1x8x1xf32>
    %27 = vector.broadcast %26 : vector<2x1x8x1xf32> to vector<2x1x8x512xf32>
    %28 = arith.mulf %1, %27 : vector<2x1x8x512xf32>
    %cst_20 = arith.constant dense<0.000000e+00> : vector<2x1x8xf32>
    %29 = vector.multi_reduction <add>, %3, %cst_20 [3] : vector<2x1x8x512xf32> to vector<2x1x8xf32>
    %30 = vector.shape_cast %29 : vector<2x1x8xf32> to vector<2x1x8x1xf32>
    %cst_21 = arith.constant 0.001953125 : f32
    %31 = vector.broadcast %cst_21 : f32 to vector<2x1x8x1xf32>
    %32 = arith.mulf %30, %31 : vector<2x1x8x1xf32>
    %33 = arith.mulf %3, %3 : vector<2x1x8x512xf32>
    %cst_22 = arith.constant dense<0.000000e+00> : vector<2x1x8xf32>
    %34 = vector.multi_reduction <add>, %33, %cst_22 [3] : vector<2x1x8x512xf32> to vector<2x1x8xf32>
    %35 = vector.shape_cast %34 : vector<2x1x8xf32> to vector<2x1x8x1xf32>
    %cst_23 = arith.constant 0.001953125 : f32
    %36 = vector.broadcast %cst_23 : f32 to vector<2x1x8x1xf32>
    %37 = arith.mulf %35, %36 : vector<2x1x8x1xf32>
    %38 = arith.mulf %32, %32 : vector<2x1x8x1xf32>
    %39 = arith.subf %37, %38 : vector<2x1x8x1xf32>
    %cst_24 = arith.constant 0.000000e+00 : f32
    %40 = vector.broadcast %cst_24 : f32 to vector<2x1x8x1xf32>
    %41 = arith.maximumf %39, %40 : vector<2x1x8x1xf32>
    %cst_25 = arith.constant 9.99999974E-6 : f32
    %42 = vector.broadcast %cst_25 : f32 to vector<2x1x8x1xf32>
    %43 = arith.addf %41, %42 : vector<2x1x8x1xf32>
    %44 = math.rsqrt %43 : vector<2x1x8x1xf32>
    %45 = vector.shape_cast %9 : vector<8x1xf32> to vector<1x1x8x1xf32>
    %46 = vector.broadcast %45 : vector<1x1x8x1xf32> to vector<2x1x8x1xf32>
    %47 = arith.mulf %46, %44 : vector<2x1x8x1xf32>
    %48 = arith.mulf %47, %32 : vector<2x1x8x1xf32>
    %49 = vector.shape_cast %11 : vector<8x1xf32> to vector<1x1x8x1xf32>
    %50 = vector.broadcast %49 : vector<1x1x8x1xf32> to vector<2x1x8x1xf32>
    %51 = arith.subf %50, %48 : vector<2x1x8x1xf32>
    %52 = vector.broadcast %47 : vector<2x1x8x1xf32> to vector<2x1x8x512xf32>
    %53 = arith.mulf %52, %3 : vector<2x1x8x512xf32>
    %54 = vector.broadcast %51 : vector<2x1x8x1xf32> to vector<2x1x8x512xf32>
    %55 = arith.addf %53, %54 : vector<2x1x8x512xf32>
    %cst_26 = arith.constant 5.000000e-01 : f32
    %56 = vector.broadcast %cst_26 : f32 to vector<2x1x8x512xf32>
    %57 = arith.mulf %56, %55 : vector<2x1x8x512xf32>
    %58 = math.tanh %57 : vector<2x1x8x512xf32>
    %cst_27 = arith.constant 5.000000e-01 : f32
    %59 = vector.broadcast %cst_27 : f32 to vector<2x1x8x512xf32>
    %60 = arith.mulf %59, %58 : vector<2x1x8x512xf32>
    %cst_28 = arith.constant 5.000000e-01 : f32
    %61 = vector.broadcast %cst_28 : f32 to vector<2x1x8x512xf32>
    %62 = arith.addf %61, %60 : vector<2x1x8x512xf32>
    %63 = arith.mulf %3, %62 : vector<2x1x8x512xf32>
    %c0_29 = arith.constant 0 : index
    %c0_30 = arith.constant 0 : index
    %c0_31 = arith.constant 0 : index
    %c0_32 = arith.constant 0 : index
    %c0_33 = arith.constant 0 : index
    %64 = vector.load %arg5[%c0_29, %c0_30, %c0_31, %c0_32, %c0_33] : memref<2x1x2x8x512xf32, #tpu.memory_space<vmem>>, vector<2x1x1x8x512xf32>
    %65 = vector.shape_cast %64 : vector<2x1x1x8x512xf32> to vector<2x1x8x512xf32>
    %66 = vector.shape_cast %28 : vector<2x1x8x512xf32> to vector<2x1x1x8x512xf32>
    tpu.vector_store %arg5[%c0_29, %c0_30, %c0_31, %c0_32, %c0_33], %66 {strides = array<i32>} : memref<2x1x2x8x512xf32, #tpu.memory_space<vmem>>, vector<2x1x1x8x512xf32>,
    %c0_34 = arith.constant 0 : index
    %c0_35 = arith.constant 0 : index
    %c1_36 = arith.constant 1 : index
    %c0_37 = arith.constant 0 : index
    %c0_38 = arith.constant 0 : index
    %67 = vector.load %arg5[%c0_34, %c0_35, %c1_36, %c0_37, %c0_38] : memref<2x1x2x8x512xf32, #tpu.memory_space<vmem>>, vector<2x1x1x8x512xf32>
    %68 = vector.shape_cast %67 : vector<2x1x1x8x512xf32> to vector<2x1x8x512xf32>
    %69 = vector.shape_cast %63 : vector<2x1x8x512xf32> to vector<2x1x1x8x512xf32>
    tpu.vector_store %arg5[%c0_34, %c0_35, %c1_36, %c0_37, %c0_38], %69 {strides = array<i32>} : memref<2x1x2x8x512xf32, #tpu.memory_space<vmem>>, vector<2x1x1x8x512xf32>,
    return
  }
  func.func @transform_0(%arg0: i32, %arg1: i32, %arg2: i32) -> (i32, i32, i32, i32, i32) {
    %c1_i32 = arith.constant 1 : i32
    %0 = arith.muli %arg0, %c1_i32 : i32
    %1 = arith.addi %0, %arg2 : i32
    %c0_i32 = arith.constant 0 : i32
    %c0_i32_0 = arith.constant 0 : i32
    %c0_i32_1 = arith.constant 0 : i32
    %c0_i32_2 = arith.constant 0 : i32
    return %arg1, %1, %c0_i32, %c0_i32_0, %c0_i32_1 : i32, i32, i32, i32, i32
  }
  func.func @transform_1(%arg0: i32, %arg1: i32, %arg2: i32) -> (i32, i32, i32) {
    %c0_i32 = arith.constant 0 : i32
    %c0_i32_0 = arith.constant 0 : i32
    %c0_i32_1 = arith.constant 0 : i32
    %c0_i32_2 = arith.constant 0 : i32
    return %c0_i32, %c0_i32_0, %c0_i32_1 : i32, i32, i32
  }
  func.func @transform_2(%arg0: i32, %arg1: i32, %arg2: i32) -> (i32, i32, i32, i32, i32) {
    %c0_i32 = arith.constant 0 : i32
    %c0_i32_0 = arith.constant 0 : i32
    %c0_i32_1 = arith.constant 0 : i32
    return %arg1, %arg2, %c0_i32, %c0_i32_0, %arg0 : i32, i32, i32, i32, i32
  }
}

</mosaic_0001>

<llo_original>
// kernel: shuffle_attention.1
$region0: #{shuffle_attention.1}
  #allocation0 [shape = 'u32[]', space=smem, size = 0x4, offset = 0x4, fixed_abs, tag = 'smem constant byte address 0x4 - core index']
  #allocation1 [shape = 'u32[144,128]{1,0:T(1,128)}', space=vmem, size = 0x12000, scoped, tag = 'internal scratch']
  %s0 = inlined_call_operand.vmem [shape: f32[2,2,2,8,512], index: 0, kind: input, shape index: {}]
  %s1 = inlined_call_operand.vmem [shape: f32[4,8,1], index: 1, kind: input, shape index: {}]
  %s2 = inlined_call_operand.vmem [shape: f32[2,1,2,8,1024], index: 2, kind: output, shape index: {}]
  %s3 = sld [smem:[#allocation0]]
  $region83: #{shuffle_attention.1} parent=0
    _
  %s5 = ssub.s32 1, %s3
  %s6 = scalar_select 0, %s5, %s3
  $region1: #{shuffle_attention.1} parent=0
    #allocation2 [shape = 'u8[131072]{0}', space=vmem, size = 0x20000, scoped, tag = 'input window, operand 0']
    #allocation3 [shape = 'u8[131072]{0}', space=vmem, size = 0x20000, scoped, tag = 'output window, operand 0']
    loop: start=0, step=1, limit=4
    $region2: #{shuffle_attention.1} parent=1 // loop_pre_header
      _
    $region3: #{shuffle_attention.1} parent=1 // loop_header
      %s8 = sphi 0, %s12
      %p9 = scmp.ge.s32.totalorder %s8, 4
      %s15 = sphi 0, %s34
      %s16 = sphi 0, %s30
      %s17 = sphi 0, %s26
      %s18 = sphi 0, %s15
      %s19 = sphi 0, %s16
      %s20 = sphi 0, %s17
      %s21 = sphi 0, %s18
      %s22 = sphi 0, %s19
      %s23 = sphi 0, %s20
      %s41 = sphi 0, %s43
      %s44 = sphi 0, %s41
      %s45 = sphi 0, %s44
      %s61 = sphi 0, %s45
      %s65 = sphi 0, %s65
      %s67 = sphi 0, %s65
      %s68 = sphi 0, %s67
      %s82 = sphi 0, %s68
      %s92 = sphi 0, %s94
      %s95 = sphi 0, %s92
      %s96 = sphi 0, %s95
      %s112 = sphi 0, %s96
    $region4: #{shuffle_attention.1} parent=1 // loop_header_branch
      %11 = sbr.rel (%p9) target = $region8
    $region5: #{shuffle_attention.1} parent=1 // loop_body
      %s13 = ssub.s32 %s8, 1
      %s14 = ssub.s32 %s8, 2
      %s24 = sadd.s32 1, %s17
      %p25 = scmp.ge.s32.totalorder %s24, 1
      %s26 = scalar_select %p25, 0, %s24
      %s27 = sadd.s32 1, %s16
      %s28 = scalar_select %p25, %s27, %s16
      %p29 = scmp.ge.s32.totalorder %s28, 1
      %s30 = scalar_select %p29, 0, %s28
      %s31 = sadd.s32 1, %s15
      %s32 = scalar_select %p29, %s31, %s15
      %p33 = scmp.ge.s32.totalorder %s32, 2
      %s34 = scalar_select %p33, 0, %s32
      %s35 = sadd.s32 %s15, %s17
      %s36 = sadd.s32 %s34, %s26
      %s37 = ssub.s32 %s16, %s30
      %s38 = ssub.s32 %s35, %s36
      %s39 = sor.u32 %s37, %s38
      %p40 = scmp.eq.s32.totalorder %s39, 0
      %s42 = sadd.s32 %s41, 1
      %s43 = scalar_select %p40, %s41, %s42
      %p46 = pneg %p40
      %p47 = scmp.eq.s32.totalorder %s8, 1
      %p48 = por %p46, %p47
      %p49 = scmp.ne.s32.totalorder %s41, %s44
      %p50 = scmp.eq.s32.totalorder %s8, 0
      %p51 = por %p49, %p50
      %p52 = scmp.ne.s32.totalorder %s41, %s44
      %p53 = scmp.eq.s32.totalorder %s13, 1
      %p54 = por %p52, %p53
      %p55 = scmp.ne.s32.totalorder %s44, %s45
      %p56 = scmp.eq.s32.totalorder %s13, 0
      %p57 = por %p55, %p56
      %p58 = scmp.ne.s32.totalorder %s44, %s45
      %p59 = scmp.eq.s32.totalorder %s14, 1
      %p60 = por %p58, %p59
      %p62 = scmp.ne.s32.totalorder %s45, %s61
      %p63 = scmp.eq.s32.totalorder %s14, 0
      %p64 = por %p62, %p63
      %s66 = sadd.s32 %s65, 1
      %p69 = scmp.eq.s32.totalorder %s8, 1
      %p70 = scmp.ne.s32.totalorder %s65, %s67
      %p71 = scmp.eq.s32.totalorder %s8, 0
      %p72 = por %p70, %p71
      %p73 = scmp.ne.s32.totalorder %s65, %s67
      %p74 = scmp.eq.s32.totalorder %s13, 1
      %p75 = por %p73, %p74
      %p76 = scmp.ne.s32.totalorder %s67, %s68
      %p77 = scmp.eq.s32.totalorder %s13, 0
      %p78 = por %p76, %p77
      %p79 = scmp.ne.s32.totalorder %s67, %s68
      %p80 = scmp.eq.s32.totalorder %s14, 1
      %p81 = por %p79, %p80
      %p83 = scmp.ne.s32.totalorder %s68, %s82
      %p84 = scmp.eq.s32.totalorder %s14, 0
      %p85 = por %p83, %p84
      %s86 = ssub.s32 %s16, %s30
      %s87 = ssub.s32 %s17, %s26
      %s88 = sor.u32 %s86, %s87
      %s89 = ssub.s32 %s15, %s34
      %s90 = sor.u32 %s88, %s89
      %p91 = scmp.eq.s32.totalorder %s90, 0
      %s93 = sadd.s32 %s92, 1
      %s94 = scalar_select %p91, %s92, %s93
      %p97 = pneg %p91
      %p98 = scmp.eq.s32.totalorder %s8, 1
      %p99 = por %p97, %p98
      %p100 = scmp.ne.s32.totalorder %s92, %s95
      %p101 = scmp.eq.s32.totalorder %s8, 0
      %p102 = por %p100, %p101
      %p103 = scmp.ne.s32.totalorder %s92, %s95
      %p104 = scmp.eq.s32.totalorder %s13, 1
      %p105 = por %p103, %p104
      %p106 = scmp.ne.s32.totalorder %s95, %s96
      %p107 = scmp.eq.s32.totalorder %s13, 0
      %p108 = por %p106, %p107
      %p109 = scmp.ne.s32.totalorder %s95, %s96
      %p110 = scmp.eq.s32.totalorder %s14, 1
      %p111 = por %p109, %p110
      %p113 = scmp.ne.s32.totalorder %s96, %s112
      %p114 = scmp.eq.s32.totalorder %s14, 0
      %p115 = por %p113, %p114
      %p116 = scmp.le.s32.totalorder 1, %s8
      %p117 = scmp.lt.s32.totalorder %s8, 3
      %p118 = pnand %p116, %p117
      %p119 = pneg %p118
      // Predicated region
      $region9: #{shuffle_attention.1} parent=5 // pred_check
        _
      $region10: #{shuffle_attention.1} parent=5 // pred_check_branch
        %121 = sbr.rel (%p118) target = $region12
      $region11: #{shuffle_attention.1} parent=5 // pred_region
        %s122 = ssub.s32 %s8, 1
        // Predicated region
        $region13: #{shuffle_attention.1} parent=11 // pred_check
          %p123 = pneg %p78
        $region14: #{shuffle_attention.1} parent=11 // pred_check_branch
          %125 = sbr.rel (%p123) target = $region16
        $region15: #{shuffle_attention.1} parent=11 // pred_region
          _
        $region16: #{shuffle_attention.1} parent=11 // pred_fallthru
          _
      $region12: #{shuffle_attention.1} parent=5 // pred_fallthru
        _
      %p126 = scmp.lt.s32.totalorder %s8, 2
      // Predicated region
      $region17: #{shuffle_attention.1} parent=5 // pred_check
        %p127 = pneg %p126
      $region18: #{shuffle_attention.1} parent=5 // pred_check_branch
        %129 = sbr.rel (%p127) target = $region20
      $region19: #{shuffle_attention.1} parent=5 // pred_region
        // Predicated region
        $region21: #{shuffle_attention.1} parent=19 // pred_check
          %p130 = pneg %p51
        $region22: #{shuffle_attention.1} parent=19 // pred_check_branch
          %132 = sbr.rel (%p130) target = $region24
        $region23: #{shuffle_attention.1} parent=19 // pred_region
          %s133 = sand.u32 %s41, 1
          %s134 = sand.u32 %s41, 1
          %s135 = smul.addr %s134, 128
          %s136 = scalar_lea.vmem [#allocation2], %s135
          %s137 = sadd.s32 %s15, %s17
          %s138 = smul.u32 2, %s16
          %s139 = smul.addr %s137, 8
          %s140 = smul.addr %s138, 16
          %s141 = sadd.s32 %s139, %s140
          %s142 = smul.addr %s141, 8
          %s143 = scalar_lea.vmem %s0, %s142
          // Predicated region
          $region25: #{shuffle_attention.1} parent=23 // pred_check
            _
          $region26: #{shuffle_attention.1} parent=23 // pred_check_branch
            %145 = sbr.rel (0) target = $region28
          $region27: #{shuffle_attention.1} parent=23 // pred_region
            // Predicated region
            $region29: #{shuffle_attention.1} parent=27 // pred_check
              _
            $region30: #{shuffle_attention.1} parent=27 // pred_check_branch
              %147 = sbr.rel (0) target = $region32
            $region31: #{shuffle_attention.1} parent=27 // pred_region
              loop: start=0, step=1, limit=1
              $region33: #{shuffle_attention.1} parent=31 // loop_pre_header
                _
              $region34: #{shuffle_attention.1} parent=31 // loop_header
                %s149 = sphi 0, %s153
                %p150 = scmp.ge.s32.totalorder %s149, 1
                %s154 = sphi %s143, %s143
                %s155 = sphi %s136, %s136
              $region35: #{shuffle_attention.1} parent=31 // loop_header_branch
                %152 = sbr.rel (%p150) target = $region39
              $region36: #{shuffle_attention.1} parent=31 // loop_body
                %v156 = vld [vmem:[%s154] sm:$0xff]
                %157 = vst [vmem:[%s155] sm:$0xff] %v156
                %v158 = vld [vmem:[%s154 + $0x8] sm:$0xff]
                %159 = vst [vmem:[%s155 + $0x8] sm:$0xff] %v158
                %v160 = vld [vmem:[%s154 + $0x10] sm:$0xff]
                %161 = vst [vmem:[%s155 + $0x10] sm:$0xff] %v160
                %v162 = vld [vmem:[%s154 + $0x18] sm:$0xff]
                %163 = vst [vmem:[%s155 + $0x18] sm:$0xff] %v162
                %v164 = vld [vmem:[%s154 + $0x20] sm:$0xff]
                %165 = vst [vmem:[%s155 + $0x20] sm:$0xff] %v164
                %v166 = vld [vmem:[%s154 + $0x28] sm:$0xff]
                %167 = vst [vmem:[%s155 + $0x28] sm:$0xff] %v166
                %v168 = vld [vmem:[%s154 + $0x30] sm:$0xff]
                %169 = vst [vmem:[%s155 + $0x30] sm:$0xff] %v168
                %v170 = vld [vmem:[%s154 + $0x38] sm:$0xff]
                %171 = vst [vmem:[%s155 + $0x38] sm:$0xff] %v170
                %v172 = vld [vmem:[%s154 + $0x80] sm:$0xff]
                %173 = vst [vmem:[%s155 + $0x40] sm:$0xff] %v172
                %v174 = vld [vmem:[%s154 + $0x88] sm:$0xff]
                %175 = vst [vmem:[%s155 + $0x48] sm:$0xff] %v174
                %v176 = vld [vmem:[%s154 + $0x90] sm:$0xff]
                %177 = vst [vmem:[%s155 + $0x50] sm:$0xff] %v176
                %v178 = vld [vmem:[%s154 + $0x98] sm:$0xff]
                %179 = vst [vmem:[%s155 + $0x58] sm:$0xff] %v178
                %v180 = vld [vmem:[%s154 + $0xa0] sm:$0xff]
                %181 = vst [vmem:[%s155 + $0x60] sm:$0xff] %v180
                %v182 = vld [vmem:[%s154 + $0xa8] sm:$0xff]
                %183 = vst [vmem:[%s155 + $0x68] sm:$0xff] %v182
                %v184 = vld [vmem:[%s154 + $0xb0] sm:$0xff]
                %185 = vst [vmem:[%s155 + $0x70] sm:$0xff] %v184
                %v186 = vld [vmem:[%s154 + $0xb8] sm:$0xff]
                %187 = vst [vmem:[%s155 + $0x78] sm:$0xff] %v186
              $region37: #{shuffle_attention.1} parent=31 // loop_footer
                %s153 = sadd.s32 1, %s149
              $region38: #{shuffle_attention.1} parent=31 // loop_footer_branch
                %148 = sbr.rel target = $region34
              $region39: #{shuffle_attention.1} parent=31 // loop_exit
                _
            $region32: #{shuffle_attention.1} parent=27 // pred_fallthru
              _
            // Predicated region
            $region40: #{shuffle_attention.1} parent=27 // pred_check
              _
            $region41: #{shuffle_attention.1} parent=27 // pred_check_branch
              %189 = sbr.rel target = $region43
            $region42: #{shuffle_attention.1} parent=27 // pred_region
              _
            $region43: #{shuffle_attention.1} parent=27 // pred_fallthru
              _
          $region28: #{shuffle_attention.1} parent=23 // pred_fallthru
            _
          %190 = vnop
        $region24: #{shuffle_attention.1} parent=19 // pred_fallthru
          _
      $region20: #{shuffle_attention.1} parent=5 // pred_fallthru
        _
      %p191 = scmp.le.s32.totalorder 1, %s8
      %p192 = scmp.lt.s32.totalorder %s8, 3
      %p193 = pnand %p191, %p192
      %p194 = pneg %p193
      // Predicated region
      $region44: #{shuffle_attention.1} parent=5 // pred_check
        _
      $region45: #{shuffle_attention.1} parent=5 // pred_check_branch
        %196 = sbr.rel (%p193) target = $region47
      $region46: #{shuffle_attention.1} parent=5 // pred_region
        %s197 = ssub.s32 %s8, 1
        %s198 = sand.u32 %s44, 1
        %s199 = sand.u32 %s44, 1
        %s200 = smul.addr %s199, 128
        %s201 = scalar_lea.vmem [#allocation2], %s200
        // Predicated region
        $region48: #{shuffle_attention.1} parent=46 // pred_check
          %p202 = pneg %p57
        $region49: #{shuffle_attention.1} parent=46 // pred_check_branch
          %204 = sbr.rel (%p202) target = $region51
        $region50: #{shuffle_attention.1} parent=46 // pred_region
          _
        $region51: #{shuffle_attention.1} parent=46 // pred_fallthru
          _
        %s205 = sand.u32 %s44, 1
        %s206 = sand.u32 %s44, 1
        %s207 = smul.addr %s206, 128
        %s208 = scalar_lea.vmem [#allocation2], %s207
        %p209 = pneg %p57
        %p210 = pneg %p54
        %p211 = pneg %p78
        %p212 = pneg %p75
        %p213 = pneg %p108
        %p214 = pneg %p105
        %s215 = sand.u32 %s95, 1
        %s216 = sand.u32 %s95, 1
        %s217 = smul.addr %s216, 128
        %s218 = scalar_lea.vmem [#allocation3], %s217
        %s219 = sadd.s32 %s18, %s20
        %s220 = smul.u32 2, %s19
        %s221 = smul.u32 2, %s19
        %s222 = smul.u32 4, %s18
        %v223 = vld [vmem:[%s201] sm:$0xff]
        %v224 = vld [vmem:[%s201 + $0x8] sm:$0xff]
        %v225 = vld [vmem:[%s201 + $0x10] sm:$0xff]
        %v226 = vld [vmem:[%s201 + $0x18] sm:$0xff]
        %v227 = vld [vmem:[%s201 + $0x40] sm:$0xff]
        %v228 = vld [vmem:[%s201 + $0x48] sm:$0xff]
        %v229 = vld [vmem:[%s201 + $0x50] sm:$0xff]
        %v230 = vld [vmem:[%s201 + $0x58] sm:$0xff]
        %s231 = scalar_lea.vmem %s201, 32 [#allocation2]
        %v232 = vld [vmem:[%s231] sm:$0xff]
        %v233 = vld [vmem:[%s231 + $0x8] sm:$0xff]
        %v234 = vld [vmem:[%s231 + $0x10] sm:$0xff]
        %v235 = vld [vmem:[%s231 + $0x18] sm:$0xff]
        %v236 = vld [vmem:[%s231 + $0x40] sm:$0xff]
        %v237 = vld [vmem:[%s231 + $0x48] sm:$0xff]
        %v238 = vld [vmem:[%s231 + $0x50] sm:$0xff]
        %v239 = vld [vmem:[%s231 + $0x58] sm:$0xff]
        %v240 = vld [vmem:[%s1] sm:$0xff]
        %s241 = scalar_lea.vmem %s1, 8
        %v242 = vld [vmem:[%s241] sm:$0xff]
        %s243 = scalar_lea.vmem %s1, 16
        %v244 = vld [vmem:[%s243] sm:$0xff]
        %s245 = scalar_lea.vmem %s1, 24
        %v246 = vld [vmem:[%s245] sm:$0xff]
        %v247 = vadd.f32 %v223, %v224
        %v248 = vadd.f32 %v247, %v225
        %v249 = vadd.f32 %v248, %v226
        %250 = vadd.xlane.f32.xlu0 %v249
        %v251 = vpop.xlane.xlu0 %250
        %v252 = vadd.f32 %v227, %v228
        %v253 = vadd.f32 %v252, %v229
        %v254 = vadd.f32 %v253, %v230
        %255 = vadd.xlane.f32.xlu0 %v254
        %v256 = vpop.xlane.xlu0 %255
        %v257 = vmul.f32 %v251, 0.001953125
        %v258 = vmul.f32 %v256, 0.001953125
        %v259 = vmul.f32 %v240, %v257
        %v260 = vmul.f32 %v240, %v258
        %v261 = vadd.f32 %v259, %v242
        %v262 = vadd.f32 %v260, %v242
        %v263 = vxor.u32 %v261, 2147483648
        %v264 = vxor.u32 %v262, 2147483648
        %v265 = vmul.f32 %v263, 1.442695
        %v266 = vpow.pop %v265
        %v267 = vmul.f32 %v264, 1.442695
        %v268 = vpow.pop %v267
        %v269 = vadd.f32 %v266, 1.0
        %v270 = vadd.f32 %v268, 1.0
        %v271 = vrcp.pop %v269
        %v272 = vmul.f32 1.0, %v271
        %v273 = vrcp.pop %v270
        %v274 = vmul.f32 1.0, %v273
        %276 = vset.pattern.permute.xlu0 0
        %277 = vperm.xlu0 %276, %v272
        %v278 = vpop.permute.xlu0 %277
        %281 = vset.pattern.permute.xlu0 0
        %282 = vperm.xlu0 %281, %v274
        %v283 = vpop.permute.xlu0 %282
        %v285 = vmul.f32 %v223, %v278
        %v286 = vmul.f32 %v224, %v278
        %v287 = vmul.f32 %v225, %v278
        %v288 = vmul.f32 %v226, %v278
        %v289 = vmul.f32 %v227, %v283
        %v290 = vmul.f32 %v228, %v283
        %v291 = vmul.f32 %v229, %v283
        %v292 = vmul.f32 %v230, %v283
        %v293 = vadd.f32 %v232, %v233
        %v294 = vadd.f32 %v293, %v234
        %v295 = vadd.f32 %v294, %v235
        %296 = vadd.xlane.f32.xlu0 %v295
        %v297 = vpop.xlane.xlu0 %296
        %v298 = vadd.f32 %v236, %v237
        %v299 = vadd.f32 %v298, %v238
        %v300 = vadd.f32 %v299, %v239
        %301 = vadd.xlane.f32.xlu0 %v300
        %v302 = vpop.xlane.xlu0 %301
        %v303 = vmul.f32 %v297, 0.001953125
        %v304 = vmul.f32 %v302, 0.001953125
        %v305 = vmul.f32 %v232, %v232
        %v306 = vmul.f32 %v233, %v233
        %v307 = vmul.f32 %v234, %v234
        %v308 = vmul.f32 %v235, %v235
        %v309 = vmul.f32 %v236, %v236
        %v310 = vmul.f32 %v237, %v237
        %v311 = vmul.f32 %v238, %v238
        %v312 = vmul.f32 %v239, %v239
        %v313 = vadd.f32 %v305, %v306
        %v314 = vadd.f32 %v313, %v307
        %v315 = vadd.f32 %v314, %v308
        %316 = vadd.xlane.f32.xlu0 %v315
        %v317 = vpop.xlane.xlu0 %316
        %v318 = vadd.f32 %v309, %v310
        %v319 = vadd.f32 %v318, %v311
        %v320 = vadd.f32 %v319, %v312
        %321 = vadd.xlane.f32.xlu0 %v320
        %v322 = vpop.xlane.xlu0 %321
        %v323 = vmul.f32 %v317, 0.001953125
        %v324 = vmul.f32 %v322, 0.001953125
        %v325 = vmul.f32 %v303, %v303
        %v326 = vmul.f32 %v304, %v304
        %v327 = vsub.f32 %v323, %v325
        %v328 = vsub.f32 %v324, %v326
        %v329 = vmax.f32 %v327, 0.0
        %v330 = vmax.f32 %v328, 0.0
        %v331 = vadd.f32 %v329, 1e-05
        %v332 = vadd.f32 %v330, 1e-05
        %v333 = vrsqrt.pop %v331
        %v334 = vrsqrt.pop %v332
        %v335 = vmul.f32 %v244, %v333
        %v336 = vmul.f32 %v244, %v334
        %v337 = vmul.f32 %v335, %v303
        %v338 = vmul.f32 %v336, %v304
        %v339 = vsub.f32 %v246, %v337
        %v340 = vsub.f32 %v246, %v338
        %342 = vset.pattern.permute.xlu0 0
        %343 = vperm.xlu0 %342, %v335
        %v344 = vpop.permute.xlu0 %343
        %347 = vset.pattern.permute.xlu0 0
        %348 = vperm.xlu0 %347, %v336
        %v349 = vpop.permute.xlu0 %348
        %v351 = vmul.f32 %v344, %v232
        %v352 = vmul.f32 %v344, %v233
        %v353 = vmul.f32 %v344, %v234
        %v354 = vmul.f32 %v344, %v235
        %v355 = vmul.f32 %v349, %v236
        %v356 = vmul.f32 %v349, %v237
        %v357 = vmul.f32 %v349, %v238
        %v358 = vmul.f32 %v349, %v239
        %360 = vset.pattern.permute.xlu0 0
        %361 = vperm.xlu0 %360, %v339
        %v362 = vpop.permute.xlu0 %361
        %365 = vset.pattern.permute.xlu0 0
        %366 = vperm.xlu0 %365, %v340
        %v367 = vpop.permute.xlu0 %366
        %v369 = vadd.f32 %v351, %v362
        %v370 = vadd.f32 %v352, %v362
        %v371 = vadd.f32 %v353, %v362
        %v372 = vadd.f32 %v354, %v362
        %v373 = vadd.f32 %v355, %v367
        %v374 = vadd.f32 %v356, %v367
        %v375 = vadd.f32 %v357, %v367
        %v376 = vadd.f32 %v358, %v367
        %v377 = vmul.f32 %v369, 0.5
        %v378 = vmul.f32 %v370, 0.5
        %v379 = vmul.f32 %v371, 0.5
        %v380 = vmul.f32 %v372, 0.5
        %v381 = vmul.f32 %v373, 0.5
        %v382 = vmul.f32 %v374, 0.5
        %v383 = vmul.f32 %v375, 0.5
        %v384 = vmul.f32 %v376, 0.5
        %v385 = vtanh.pop %v377
        %v386 = vtanh.pop %v378
        %v387 = vtanh.pop %v379
        %v388 = vtanh.pop %v380
        %v389 = vtanh.pop %v381
        %v390 = vtanh.pop %v382
        %v391 = vtanh.pop %v383
        %v392 = vtanh.pop %v384
        %v393 = vmul.f32 %v385, 0.5
        %v394 = vmul.f32 %v386, 0.5
        %v395 = vmul.f32 %v387, 0.5
        %v396 = vmul.f32 %v388, 0.5
        %v397 = vmul.f32 %v389, 0.5
        %v398 = vmul.f32 %v390, 0.5
        %v399 = vmul.f32 %v391, 0.5
        %v400 = vmul.f32 %v392, 0.5
        %v401 = vadd.f32 %v393, 0.5
        %v402 = vadd.f32 %v394, 0.5
        %v403 = vadd.f32 %v395, 0.5
        %v404 = vadd.f32 %v396, 0.5
        %v405 = vadd.f32 %v397, 0.5
        %v406 = vadd.f32 %v398, 0.5
        %v407 = vadd.f32 %v399, 0.5
        %v408 = vadd.f32 %v400, 0.5
        %v409 = vmul.f32 %v232, %v401
        %v410 = vmul.f32 %v233, %v402
        %v411 = vmul.f32 %v234, %v403
        %v412 = vmul.f32 %v235, %v404
        %v413 = vmul.f32 %v236, %v405
        %v414 = vmul.f32 %v237, %v406
        %v415 = vmul.f32 %v238, %v407
        %v416 = vmul.f32 %v239, %v408
        %417 = vst [vmem:[%s218] sm:$0xff] %v285
        %418 = vst [vmem:[%s218 + $0x8] sm:$0xff] %v286
        %419 = vst [vmem:[%s218 + $0x10] sm:$0xff] %v287
        %420 = vst [vmem:[%s218 + $0x18] sm:$0xff] %v288
        %421 = vst [vmem:[%s218 + $0x40] sm:$0xff] %v289
        %422 = vst [vmem:[%s218 + $0x48] sm:$0xff] %v290
        %423 = vst [vmem:[%s218 + $0x50] sm:$0xff] %v291
        %424 = vst [vmem:[%s218 + $0x58] sm:$0xff] %v292
        %s425 = scalar_lea.vmem %s218, 32 [#allocation3]
        %426 = vst [vmem:[%s425] sm:$0xff] %v409
        %427 = vst [vmem:[%s425 + $0x8] sm:$0xff] %v410
        %428 = vst [vmem:[%s425 + $0x10] sm:$0xff] %v411
        %429 = vst [vmem:[%s425 + $0x18] sm:$0xff] %v412
        %430 = vst [vmem:[%s425 + $0x40] sm:$0xff] %v413
        %431 = vst [vmem:[%s425 + $0x48] sm:$0xff] %v414
        %432 = vst [vmem:[%s425 + $0x50] sm:$0xff] %v415
        %433 = vst [vmem:[%s425 + $0x58] sm:$0xff] %v416
        %s434 = sand.u32 %s95, 1
        %s435 = sand.u32 %s95, 1
        %s436 = smul.addr %s435, 128
        %s437 = scalar_lea.vmem [#allocation3], %s436
        // Predicated region
        $region52: #{shuffle_attention.1} parent=46 // pred_check
          %p438 = pneg %p105
        $region53: #{shuffle_attention.1} parent=46 // pred_check_branch
          %440 = sbr.rel (%p438) target = $region55
        $region54: #{shuffle_attention.1} parent=46 // pred_region
          %s441 = smul.u32 2, %s19
          %s442 = smul.u32 4, %s18
          %s443 = smul.addr %s20, 16
          %s444 = sadd.s32 %s442, %s443
          %s445 = smul.addr %s441, 16
          %s446 = sadd.s32 %s444, %s445
          %s447 = smul.addr %s446, 8
          %s448 = scalar_lea.vmem %s2, %s447
          // Predicated region
          $region56: #{shuffle_attention.1} parent=54 // pred_check
            _
          $region57: #{shuffle_attention.1} parent=54 // pred_check_branch
            %450 = sbr.rel (0) target = $region59
          $region58: #{shuffle_attention.1} parent=54 // pred_region
            // Predicated region
            $region60: #{shuffle_attention.1} parent=58 // pred_check
              _
            $region61: #{shuffle_attention.1} parent=58 // pred_check_branch
              %452 = sbr.rel (0) target = $region63
            $region62: #{shuffle_attention.1} parent=58 // pred_region
              loop: start=0, step=1, limit=1
              $region64: #{shuffle_attention.1} parent=62 // loop_pre_header
                _
              $region65: #{shuffle_attention.1} parent=62 // loop_header
                %s454 = sphi 0, %s458
                %p455 = scmp.ge.s32.totalorder %s454, 1
                %s459 = sphi %s437, %s437
                %s460 = sphi %s448, %s448
              $region66: #{shuffle_attention.1} parent=62 // loop_header_branch
                %457 = sbr.rel (%p455) target = $region70
              $region67: #{shuffle_attention.1} parent=62 // loop_body
                %v461 = vld [vmem:[%s459] sm:$0xff]
                %462 = vst [vmem:[%s460] sm:$0xff] %v461
                %v463 = vld [vmem:[%s459 + $0x8] sm:$0xff]
                %464 = vst [vmem:[%s460 + $0x8] sm:$0xff] %v463
                %v465 = vld [vmem:[%s459 + $0x10] sm:$0xff]
                %466 = vst [vmem:[%s460 + $0x10] sm:$0xff] %v465
                %v467 = vld [vmem:[%s459 + $0x18] sm:$0xff]
                %468 = vst [vmem:[%s460 + $0x18] sm:$0xff] %v467
                %v469 = vld [vmem:[%s459 + $0x20] sm:$0xff]
                %470 = vst [vmem:[%s460 + $0x40] sm:$0xff] %v469
                %v471 = vld [vmem:[%s459 + $0x28] sm:$0xff]
                %472 = vst [vmem:[%s460 + $0x48] sm:$0xff] %v471
                %v473 = vld [vmem:[%s459 + $0x30] sm:$0xff]
                %474 = vst [vmem:[%s460 + $0x50] sm:$0xff] %v473
                %v475 = vld [vmem:[%s459 + $0x38] sm:$0xff]
                %476 = vst [vmem:[%s460 + $0x58] sm:$0xff] %v475
                %v477 = vld [vmem:[%s459 + $0x40] sm:$0xff]
                %478 = vst [vmem:[%s460 + $0x80] sm:$0xff] %v477
                %v479 = vld [vmem:[%s459 + $0x48] sm:$0xff]
                %480 = vst [vmem:[%s460 + $0x88] sm:$0xff] %v479
                %v481 = vld [vmem:[%s459 + $0x50] sm:$0xff]
                %482 = vst [vmem:[%s460 + $0x90] sm:$0xff] %v481
                %v483 = vld [vmem:[%s459 + $0x58] sm:$0xff]
                %484 = vst [vmem:[%s460 + $0x98] sm:$0xff] %v483
                %v485 = vld [vmem:[%s459 + $0x60] sm:$0xff]
                %486 = vst [vmem:[%s460 + $0xc0] sm:$0xff] %v485
                %v487 = vld [vmem:[%s459 + $0x68] sm:$0xff]
                %488 = vst [vmem:[%s460 + $0xc8] sm:$0xff] %v487
                %v489 = vld [vmem:[%s459 + $0x70] sm:$0xff]
                %490 = vst [vmem:[%s460 + $0xd0] sm:$0xff] %v489
                %v491 = vld [vmem:[%s459 + $0x78] sm:$0xff]
                %492 = vst [vmem:[%s460 + $0xd8] sm:$0xff] %v491
              $region68: #{shuffle_attention.1} parent=62 // loop_footer
                %s458 = sadd.s32 1, %s454
              $region69: #{shuffle_attention.1} parent=62 // loop_footer_branch
                %453 = sbr.rel target = $region65
              $region70: #{shuffle_attention.1} parent=62 // loop_exit
                _
            $region63: #{shuffle_attention.1} parent=58 // pred_fallthru
              _
            // Predicated region
            $region71: #{shuffle_attention.1} parent=58 // pred_check
              _
            $region72: #{shuffle_attention.1} parent=58 // pred_check_branch
              %494 = sbr.rel target = $region74
            $region73: #{shuffle_attention.1} parent=58 // pred_region
              _
            $region74: #{shuffle_attention.1} parent=58 // pred_fallthru
              _
          $region59: #{shuffle_attention.1} parent=54 // pred_fallthru
            _
          %495 = vnop
        $region55: #{shuffle_attention.1} parent=46 // pred_fallthru
          _
      $region47: #{shuffle_attention.1} parent=5 // pred_fallthru
        _
      %p496 = scmp.le.s32.totalorder 2, %s8
      // Predicated region
      $region75: #{shuffle_attention.1} parent=5 // pred_check
        %p497 = pneg %p496
      $region76: #{shuffle_attention.1} parent=5 // pred_check_branch
        %499 = sbr.rel (%p497) target = $region78
      $region77: #{shuffle_attention.1} parent=5 // pred_region
        %s500 = ssub.s32 %s8, 2
        // Predicated region
        $region79: #{shuffle_attention.1} parent=77 // pred_check
          %p501 = pneg %p111
        $region80: #{shuffle_attention.1} parent=77 // pred_check_branch
          %503 = sbr.rel (%p501) target = $region82
        $region81: #{shuffle_attention.1} parent=77 // pred_region
          %s504 = sand.u32 %s96, 1
          %s505 = sand.u32 %s96, 1
          %s506 = smul.addr %s505, 128
          %s507 = scalar_lea.vmem [#allocation3], %s506
        $region82: #{shuffle_attention.1} parent=77 // pred_fallthru
          _
      $region78: #{shuffle_attention.1} parent=5 // pred_fallthru
        _
    $region6: #{shuffle_attention.1} parent=1 // loop_footer
      %s12 = sadd.s32 1, %s8
    $region7: #{shuffle_attention.1} parent=1 // loop_footer_branch
      %7 = sbr.rel target = $region3
    $region8: #{shuffle_attention.1} parent=1 // loop_exit
      _

</llo_original>
